<compile_context>
chip_gen: v6e
topology: v6e:2x2x1
jax: 0.10.0
libtpu: 0.0.40
codegen_flags: <defaults>
</compile_context>

<pallas_src>
import jax
import jax.numpy as jnp
from jax import lax
from jax.experimental import pallas as pl
from jax.experimental.pallas import tpu as pltpu


def bahdanau_kernel(dec_ref, enc_ref, w_ref, wb_ref, u_ref, ub_ref, v_ref,
                    out_ref):
    """One grid step = TB batch rows: alpha = softmax_S(v . tanh(W dec + U enc)).

    Ref shapes (per grid step i):
      dec_ref : (TB, Dd)      decoder hidden rows, f32
      enc_ref : (TB*S, E2)    encoder hidden rows (batch-major flattened), f32
      w_ref   : (A, Dd)       W weight, native PyTorch layout, f32
      wb_ref  : (1, A)        W bias (row)
      u_ref   : (A, E2)       U weight, native layout, bf16
      ub_ref  : (1, A)        U bias (row)
      v_ref   : (1, A)        v weight (native PyTorch layout)
      out_ref : (TB, S)       attention weights
    """
    tb, s = out_ref.shape
    a = u_ref.shape[0]

    # W projection on the MXU: (TB, Dd) . (Dd, A) -> (TB, A), f32.
    ws = lax.dot_general(
        dec_ref[...], w_ref[...],
        dimension_numbers=(((1,), (1,)), ((), ())),
        preferred_element_type=jnp.float32) + wb_ref[...]            # (TB, A)

    # U projection on the MXU: (TB*S, E2) . (E2, A) -> (TB*S, A),
    # bf16 operands, f32 accumulate; A @ B.T layout so nothing is transposed.
    uh = lax.dot_general(
        enc_ref[...].astype(jnp.bfloat16), u_ref[...],
        dimension_numbers=(((1,), (1,)), ((), ())),
        preferred_element_type=jnp.float32) + ub_ref[...]            # (TB*S, A)

    # Broadcast-add the decoder term over src_len and apply tanh (f32, EUP).
    act = jnp.tanh(uh.reshape(tb, s, a) + ws[:, None, :])            # (TB, S, A)

    # v projection: degenerate N=1 matmul -> VPU multiply + XLU lane reduce.
    energy = jnp.sum(act * v_ref[...], axis=-1)                      # (TB, S)

    # Softmax over src_len (lane axis), f32; EUP exp + approx reciprocal.
    m = jnp.max(energy, axis=-1, keepdims=True)
    e = jnp.exp(energy - m)
    alpha = e * pl.reciprocal(jnp.sum(e, axis=-1, keepdims=True), approx=True)

    out_ref[...] = alpha.astype(out_ref.dtype)


def prepare_params(params):
    """One-time (init-time) packing of PyTorch-layout params into kernel
    layouts. The per-call forward wrapper does NO transposes/casts."""
    return {
        "W_w": params["W_w"].astype(jnp.float32),             # (A, Dd)  f32
        "W_b": params["W_b"].astype(jnp.float32)[None, :],    # (1, A)   f32
        "U_w": params["U_w"].astype(jnp.bfloat16),             # (A, E2)  bf16 (MXU)
        "U_b": params["U_b"].astype(jnp.float32)[None, :],     # (1, A)   f32
        "v_w": params["v_w"].astype(jnp.float32),               # (1, A)   native layout
    }


def _batch_tile(batch):
    """Largest batch tile that keeps every block (8,128)-legal: either the
    whole batch (block == full array dims) or an 8-aligned divisor."""
    if batch % 8 != 0:
        return batch
    for tb in (512, 256, 128, 64, 32, 16, 8):
        if tb <= batch and batch % tb == 0:
            return tb
    return batch


def bahdanau_attention(decoder_hidden, encoder_all_hidden, prepared):
    """Forward pass. decoder_hidden: (B, Dd); encoder_all_hidden: (B, S, E2)."""
    B, Dd = decoder_hidden.shape
    _, S, E2 = encoder_all_hidden.shape
    A = prepared["U_w"].shape[0]

    TB = _batch_tile(B)
    grid = (B // TB,)

    # Free metadata reshape: rows stay batch-major contiguous.
    enc_flat = encoder_all_hidden.reshape(B * S, E2)

    args = (decoder_hidden, enc_flat, prepared["W_w"], prepared["W_b"],
            prepared["U_w"], prepared["U_b"], prepared["v_w"])

    flops = B * (2 * A * Dd + 2 * S * A * E2 + 4 * S * A + 8 * S)
    transcendentals = B * S * (A + 1)
    bytes_accessed = sum(int(x.size) * x.dtype.itemsize for x in args) + B * S * 4

    out = pl.pallas_call(
        bahdanau_kernel,
        out_shape=jax.ShapeDtypeStruct((B, S), jnp.float32),
        grid=grid,
        in_specs=[
            pl.BlockSpec((TB, Dd), lambda i: (i, 0)),        # decoder hidden
            pl.BlockSpec((TB * S, E2), lambda i: (i, 0)),    # encoder hidden (flat)
            pl.BlockSpec((A, Dd), lambda i: (0, 0)),         # W  (resident)
            pl.BlockSpec((1, A), lambda i: (0, 0)),          # W bias
            pl.BlockSpec((A, E2), lambda i: (0, 0)),         # U  (resident)
            pl.BlockSpec((1, A), lambda i: (0, 0)),          # U bias
            pl.BlockSpec((1, A), lambda i: (0, 0)),          # v
        ],
        out_specs=pl.BlockSpec((TB, S), lambda i: (i, 0)),
        compiler_params=pltpu.CompilerParams(
            dimension_semantics=("parallel",)),
        cost_estimate=pl.CostEstimate(
            flops=flops, transcendentals=transcendentals,
            bytes_accessed=bytes_accessed),
    )(*args)
    return out


def _reference(decoder_hidden, encoder_all_hidden, params):
    Ws = decoder_hidden @ params["W_w"].T + params["W_b"]
    Uh = encoder_all_hidden @ params["U_w"].T + params["U_b"]
    energy = jnp.tanh(Ws[:, None, :] + Uh) @ params["v_w"].T
    energy = energy[..., 0]
    return jax.nn.softmax(energy, axis=1)


if __name__ == "__main__":
    # Module hyperparameters (small, consistent with the forward signature).
    encoder_hidden_dim = 16      # encoder_all_hidden feature dim = 2 * 16 = 32
    decoder_hidden_dim = 32
    attention_dim = 32
    batch = 2
    src_len = 8

    key = jax.random.PRNGKey(0)
    k_dec, k_enc, k_ww, k_wb, k_uw, k_ub, k_vw = jax.random.split(key, 7)

    decoder_hidden = jax.random.normal(
        k_dec, (batch, decoder_hidden_dim), dtype=jnp.float32)
    encoder_all_hidden = jax.random.normal(
        k_enc, (batch, src_len, 2 * encoder_hidden_dim), dtype=jnp.float32)

    # Parameters in the original PyTorch nn.Linear layouts.
    params = {
        "W_w": 0.1 * jax.random.normal(
            k_ww, (attention_dim, decoder_hidden_dim), dtype=jnp.float32),
        "W_b": 0.1 * jax.random.normal(
            k_wb, (attention_dim,), dtype=jnp.float32),
        "U_w": 0.1 * jax.random.normal(
            k_uw, (attention_dim, 2 * encoder_hidden_dim), dtype=jnp.float32),
        "U_b": 0.1 * jax.random.normal(
            k_ub, (attention_dim,), dtype=jnp.float32),
        "v_w": 0.1 * jax.random.normal(
            k_vw, (1, attention_dim), dtype=jnp.float32),
    }

    prepared = prepare_params(params)   # one-time, init-time packing

    alpha = bahdanau_attention(decoder_hidden, encoder_all_hidden, prepared)
    alpha = jax.block_until_ready(alpha)

    ref = _reference(decoder_hidden, encoder_all_hidden, params)
    assert alpha.shape == (batch, src_len)
    # Tolerance loosened for bf16 MXU operands + approx reciprocal.
    assert jnp.allclose(alpha, ref, atol=1e-2, rtol=1e-2)
    assert jnp.allclose(jnp.sum(alpha, axis=1), 1.0, atol=1e-2)

    print("KERNEL_OK")
</pallas_src>

<mosaic_0001>
module attributes {stable_mosaic.version = 11 : i64} {
  func.func @bahdanau_kernel(%arg0: i32, %arg1: memref<2x32xf32, #tpu.memory_space<vmem>>, %arg2: memref<16x32xf32, #tpu.memory_space<vmem>>, %arg3: memref<32x32xf32, #tpu.memory_space<vmem>>, %arg4: memref<1x32xf32, #tpu.memory_space<vmem>>, %arg5: memref<32x32xbf16, #tpu.memory_space<vmem>>, %arg6: memref<1x32xf32, #tpu.memory_space<vmem>>, %arg7: memref<1x32xf32, #tpu.memory_space<vmem>>, %arg8: memref<2x8xf32, #tpu.memory_space<vmem>>) attributes {dimension_semantics = [#tpu.dimension_semantics<parallel>], iteration_bounds = array<i64: 1>, scalar_prefetch = 0 : i64, scratch_operands = 0 : i64, tpu.core_type = #tpu.core_type<tc>, window_params = [{transform_indices = @transform_0, window_bounds = array<i64: 2, 32>}, {transform_indices = @transform_1, window_bounds = array<i64: 16, 32>}, {pipeline_mode = #tpu.pipeline_mode<synchronous>, transform_indices = @transform_2, window_bounds = array<i64: 32, 32>}, {pipeline_mode = #tpu.pipeline_mode<synchronous>, transform_indices = @transform_3, window_bounds = array<i64: 1, 32>}, {pipeline_mode = #tpu.pipeline_mode<synchronous>, transform_indices = @transform_4, window_bounds = array<i64: 32, 32>}, {pipeline_mode = #tpu.pipeline_mode<synchronous>, transform_indices = @transform_5, window_bounds = array<i64: 1, 32>}, {pipeline_mode = #tpu.pipeline_mode<synchronous>, transform_indices = @transform_6, window_bounds = array<i64: 1, 32>}, {transform_indices = @transform_7, window_bounds = array<i64: 2, 8>}]} {
    %c0 = arith.constant 0 : index
    %c0_0 = arith.constant 0 : index
    %0 = vector.load %arg1[%c0, %c0_0] : memref<2x32xf32, #tpu.memory_space<vmem>>, vector<2x32xf32>
    %c0_1 = arith.constant 0 : index
    %c0_2 = arith.constant 0 : index
    %1 = vector.load %arg3[%c0_1, %c0_2] : memref<32x32xf32, #tpu.memory_space<vmem>>, vector<32x32xf32>
    %cst = arith.constant dense<0.000000e+00> : vector<2x32xf32>
    %2 = tpu.matmul %0, %1, %cst {dimension_numbers = #tpu.dot_dimension_numbers<[1], [1], [0], [0], [0, 0, 1, 0], [], []>} : vector<2x32xf32>, vector<32x32xf32>, vector<2x32xf32> -> vector<2x32xf32>
    %c0_3 = arith.constant 0 : index
    %c0_4 = arith.constant 0 : index
    %3 = vector.load %arg4[%c0_3, %c0_4] : memref<1x32xf32, #tpu.memory_space<vmem>>, vector<1x32xf32>
    %4 = vector.broadcast %3 : vector<1x32xf32> to vector<2x32xf32>
    %5 = arith.addf %2, %4 : vector<2x32xf32>
    %c0_5 = arith.constant 0 : index
    %c0_6 = arith.constant 0 : index
    %6 = vector.load %arg2[%c0_5, %c0_6] : memref<16x32xf32, #tpu.memory_space<vmem>>, vector<16x32xf32>
    %7 = arith.truncf %6 : vector<16x32xf32> to vector<16x32xbf16>
    %c0_7 = arith.constant 0 : index
    %c0_8 = arith.constant 0 : index
    %8 = vector.load %arg5[%c0_7, %c0_8] : memref<32x32xbf16, #tpu.memory_space<vmem>>, vector<32x32xbf16>
    %cst_9 = arith.constant dense<0.000000e+00> : vector<16x32xf32>
    %9 = tpu.matmul %7, %8, %cst_9 {dimension_numbers = #tpu.dot_dimension_numbers<[1], [1], [0], [0], [0, 0, 1, 0], [], []>} : vector<16x32xbf16>, vector<32x32xbf16>, vector<16x32xf32> -> vector<16x32xf32>
    %c0_10 = arith.constant 0 : index
    %c0_11 = arith.constant 0 : index
    %10 = vector.load %arg6[%c0_10, %c0_11] : memref<1x32xf32, #tpu.memory_space<vmem>>, vector<1x32xf32>
    %11 = vector.broadcast %10 : vector<1x32xf32> to vector<16x32xf32>
    %12 = arith.addf %9, %11 : vector<16x32xf32>
    %13 = vector.shape_cast %12 : vector<16x32xf32> to vector<2x8x32xf32>
    %14 = vector.shape_cast %5 : vector<2x32xf32> to vector<2x1x32xf32>
    %15 = vector.broadcast %14 : vector<2x1x32xf32> to vector<2x8x32xf32>
    %16 = arith.addf %13, %15 : vector<2x8x32xf32>
    %17 = math.tanh %16 : vector<2x8x32xf32>
    %c0_12 = arith.constant 0 : index
    %c0_13 = arith.constant 0 : index
    %18 = vector.load %arg7[%c0_12, %c0_13] : memref<1x32xf32, #tpu.memory_space<vmem>>, vector<1x32xf32>
    %19 = vector.shape_cast %18 : vector<1x32xf32> to vector<1x1x32xf32>
    %20 = vector.broadcast %19 : vector<1x1x32xf32> to vector<2x8x32xf32>
    %21 = arith.mulf %17, %20 : vector<2x8x32xf32>
    %cst_14 = arith.constant dense<0.000000e+00> : vector<2x8xf32>
    %22 = vector.multi_reduction <add>, %21, %cst_14 [2] : vector<2x8x32xf32> to vector<2x8xf32>
    %cst_15 = arith.constant dense<0xFF800000> : vector<2xf32>
    %23 = vector.multi_reduction <maximumf>, %22, %cst_15 [1] : vector<2x8xf32> to vector<2xf32>
    %24 = vector.shape_cast %23 : vector<2xf32> to vector<2x1xf32>
    %25 = vector.broadcast %24 : vector<2x1xf32> to vector<2x8xf32>
    %26 = arith.subf %22, %25 : vector<2x8xf32>
    %27 = math.exp %26 : vector<2x8xf32>
    %cst_16 = arith.constant dense<0.000000e+00> : vector<2xf32>
    %28 = vector.multi_reduction <add>, %27, %cst_16 [1] : vector<2x8xf32> to vector<2xf32>
    %29 = vector.shape_cast %28 : vector<2xf32> to vector<2x1xf32>
    %30 = tpu.reciprocal %29 {approx = true} : vector<2x1xf32> -> vector<2x1xf32>
    %31 = vector.broadcast %30 : vector<2x1xf32> to vector<2x8xf32>
    %32 = arith.mulf %27, %31 : vector<2x8xf32>
    %c0_17 = arith.constant 0 : index
    %c0_18 = arith.constant 0 : index
    %33 = vector.load %arg8[%c0_17, %c0_18] : memref<2x8xf32, #tpu.memory_space<vmem>>, vector<2x8xf32>
    tpu.vector_store %arg8[%c0_17, %c0_18], %32 {strides = array<i32>} : memref<2x8xf32, #tpu.memory_space<vmem>>, vector<2x8xf32>,
    return
  }
  func.func @transform_0(%arg0: i32) -> (i32, i32) {
    %c0_i32 = arith.constant 0 : i32
    %c0_i32_0 = arith.constant 0 : i32
    return %arg0, %c0_i32 : i32, i32
  }
  func.func @transform_1(%arg0: i32) -> (i32, i32) {
    %c0_i32 = arith.constant 0 : i32
    %c0_i32_0 = arith.constant 0 : i32
    return %arg0, %c0_i32 : i32, i32
  }
  func.func @transform_2(%arg0: i32) -> (i32, i32) {
    %c0_i32 = arith.constant 0 : i32
    %c0_i32_0 = arith.constant 0 : i32
    %c0_i32_1 = arith.constant 0 : i32
    return %c0_i32, %c0_i32_0 : i32, i32
  }
  func.func @transform_3(%arg0: i32) -> (i32, i32) {
    %c0_i32 = arith.constant 0 : i32
    %c0_i32_0 = arith.constant 0 : i32
    %c0_i32_1 = arith.constant 0 : i32
    return %c0_i32, %c0_i32_0 : i32, i32
  }
  func.func @transform_4(%arg0: i32) -> (i32, i32) {
    %c0_i32 = arith.constant 0 : i32
    %c0_i32_0 = arith.constant 0 : i32
    %c0_i32_1 = arith.constant 0 : i32
    return %c0_i32, %c0_i32_0 : i32, i32
  }
  func.func @transform_5(%arg0: i32) -> (i32, i32) {
    %c0_i32 = arith.constant 0 : i32
    %c0_i32_0 = arith.constant 0 : i32
    %c0_i32_1 = arith.constant 0 : i32
    return %c0_i32, %c0_i32_0 : i32, i32
  }
  func.func @transform_6(%arg0: i32) -> (i32, i32) {
    %c0_i32 = arith.constant 0 : i32
    %c0_i32_0 = arith.constant 0 : i32
    %c0_i32_1 = arith.constant 0 : i32
    return %c0_i32, %c0_i32_0 : i32, i32
  }
  func.func @transform_7(%arg0: i32) -> (i32, i32) {
    %c0_i32 = arith.constant 0 : i32
    %c0_i32_0 = arith.constant 0 : i32
    return %arg0, %c0_i32 : i32, i32
  }
}

</mosaic_0001>

<llo_original>
// kernel: tpu_custom_call.1
$region0: #{tpu_custom_call.1}
  #allocation0 [shape = 'u32[]', space=smem, size = 0x4, offset = 0x4, fixed_abs, tag = 'smem constant byte address 0x4 - core index']
  #allocation1 [shape = 'u32[144,128]{1,0:T(1,128)}', space=vmem, size = 0x12000, scoped, tag = 'internal scratch']
  %s0 = inlined_call_operand.hbm [shape: f32[2,32], index: 0, kind: input, shape index: {}]
  %s1 = inlined_call_operand.hbm [shape: f32[16,32], index: 1, kind: input, shape index: {}]
  %s2 = inlined_call_operand.hbm [shape: f32[32,32], index: 2, kind: input, shape index: {}]
  %s3 = inlined_call_operand.vmem [shape: f32[1,32], index: 3, kind: input, shape index: {}]
  %s4 = inlined_call_operand.hbm [shape: bf16[32,32], index: 4, kind: input, shape index: {}]
  %s5 = inlined_call_operand.vmem [shape: f32[1,32], index: 5, kind: input, shape index: {}]
  %s6 = inlined_call_operand.vmem [shape: f32[1,32], index: 6, kind: input, shape index: {}]
  %s7 = inlined_call_operand.hbm [shape: f32[2,8], index: 7, kind: output, shape index: {}]
  %s8 = sld [smem:[#allocation0]]
  $region54: #{tpu_custom_call.1} parent=0
    _
  %s10 = ssub.s32 1, %s8
  %s11 = scalar_select 0, %s10, %s8
  $region1: #{tpu_custom_call.1} parent=0
    #allocation2 [shape = 'u8[1024]{0}', space=vmem, size = 0x400, scoped, tag = 'input window, operand 0, single buffered']
    #allocation3 [shape = 's32[1]{0}', space=sflag, size = 0x4, scoped, tag = 'scoped memory for tpu_custom_call.1']
    #allocation4 [shape = 's32[1]{0}', space=sflag, size = 0x4, scoped, tag = 'scoped memory for tpu_custom_call.1']
    #allocation5 [shape = 'u8[8192]{0}', space=vmem, size = 0x2000, scoped, tag = 'input window, operand 1, single buffered']
    #allocation6 [shape = 's32[1]{0}', space=sflag, size = 0x4, scoped, tag = 'scoped memory for tpu_custom_call.1']
    #allocation7 [shape = 'u8[16384]{0}', space=vmem, size = 0x4000, scoped, tag = 'input window, operand 2, single buffered']
    #allocation8 [shape = 'u8[8192]{0}', space=vmem, size = 0x2000, scoped, tag = 'input window, operand 4, single buffered']
    #allocation9 [shape = 's32[1]{0}', space=sflag, size = 0x4, scoped, tag = 'scoped memory for tpu_custom_call.1']
    #allocation10 [shape = 'u8[1024]{0}', space=vmem, size = 0x400, scoped, tag = 'output window, operand 0, single buffered']
    %12 = vsyncpa [#allocation3], 0
    %13 = vsyncpa [#allocation6], 0
    %14 = vsyncpa [#allocation9], 0
    %15 = vsyncpa [#allocation4], 0
    // Predicated region
    $region2: #{tpu_custom_call.1} parent=1 // pred_check
      _
    $region3: #{tpu_custom_call.1} parent=1 // pred_check_branch
      %17 = sbr.rel (0) target = $region5
    $region4: #{tpu_custom_call.1} parent=1 // pred_region
      %s19 = ssub.s32 32, 32
      %20 = vsyncadd [#allocation3], %s19
      %s22 = sshll.u32 [#allocation2], 4
      %s23 = int_to_ptr.vmem [resolvable:$true] %s22
      %25 = dma.hbm_to_vmem [thread:$0]  %s0, 32, %s23, [#allocation3]
    $region5: #{tpu_custom_call.1} parent=1 // pred_fallthru
      _
    // Predicated region
    $region6: #{tpu_custom_call.1} parent=1 // pred_check
      _
    $region7: #{tpu_custom_call.1} parent=1 // pred_check_branch
      %27 = sbr.rel (0) target = $region9
    $region8: #{tpu_custom_call.1} parent=1 // pred_region
      %s29 = ssub.s32 256, 256
      %30 = vsyncadd [#allocation6], %s29
      %s31 = sshll.u32 [#allocation5], 4
      %s32 = int_to_ptr.vmem [resolvable:$true] %s31
      %37 = dma.hbm_to_vmem [thread:$0]  %s1, 256, %s32, [#allocation6], 128, 128, 8
    $region9: #{tpu_custom_call.1} parent=1 // pred_fallthru
      _
    // Predicated region
    $region10: #{tpu_custom_call.1} parent=1 // pred_check
      _
    $region11: #{tpu_custom_call.1} parent=1 // pred_check_branch
      %39 = sbr.rel (0) target = $region13
    $region12: #{tpu_custom_call.1} parent=1 // pred_region
      %s41 = ssub.s32 512, 512
      %42 = vsyncadd [#allocation6], %s41
      %s43 = sshll.u32 [#allocation7], 4
      %s44 = int_to_ptr.vmem [resolvable:$true] %s43
      %49 = dma.hbm_to_vmem [thread:$0]  %s2, 512, %s44, [#allocation6], 128, 128, 8
    $region13: #{tpu_custom_call.1} parent=1 // pred_fallthru
      _
    // Predicated region
    $region14: #{tpu_custom_call.1} parent=1 // pred_check
      _
    $region15: #{tpu_custom_call.1} parent=1 // pred_check_branch
      %51 = sbr.rel (0) target = $region17
    $region16: #{tpu_custom_call.1} parent=1 // pred_region
      _
    $region17: #{tpu_custom_call.1} parent=1 // pred_fallthru
      _
    // Predicated region
    $region18: #{tpu_custom_call.1} parent=1 // pred_check
      _
    $region19: #{tpu_custom_call.1} parent=1 // pred_check_branch
      %53 = sbr.rel (0) target = $region21
    $region20: #{tpu_custom_call.1} parent=1 // pred_region
      %s55 = ssub.s32 256, 256
      %56 = vsyncadd [#allocation9], %s55
      %s57 = sshll.u32 [#allocation8], 4
      %s58 = int_to_ptr.vmem [resolvable:$true] %s57
      %63 = dma.hbm_to_vmem [thread:$0]  %s4, 256, %s58, [#allocation9], 64, 64, 4
    $region21: #{tpu_custom_call.1} parent=1 // pred_fallthru
      _
    // Predicated region
    $region22: #{tpu_custom_call.1} parent=1 // pred_check
      _
    $region23: #{tpu_custom_call.1} parent=1 // pred_check_branch
      %65 = sbr.rel (0) target = $region25
    $region24: #{tpu_custom_call.1} parent=1 // pred_region
      _
    $region25: #{tpu_custom_call.1} parent=1 // pred_fallthru
      _
    // Predicated region
    $region26: #{tpu_custom_call.1} parent=1 // pred_check
      _
    $region27: #{tpu_custom_call.1} parent=1 // pred_check_branch
      %67 = sbr.rel (0) target = $region29
    $region28: #{tpu_custom_call.1} parent=1 // pred_region
      _
    $region29: #{tpu_custom_call.1} parent=1 // pred_fallthru
      _
    // Predicated region
    $region30: #{tpu_custom_call.1} parent=1 // pred_check
      _
    $region31: #{tpu_custom_call.1} parent=1 // pred_check_branch
      %69 = sbr.rel (0) target = $region33
    $region32: #{tpu_custom_call.1} parent=1 // pred_region
      %70 = dma.done [#allocation3], 32
    $region33: #{tpu_custom_call.1} parent=1 // pred_fallthru
      _
    // Predicated region
    $region34: #{tpu_custom_call.1} parent=1 // pred_check
      _
    $region35: #{tpu_custom_call.1} parent=1 // pred_check_branch
      %72 = sbr.rel (0) target = $region37
    $region36: #{tpu_custom_call.1} parent=1 // pred_region
      %73 = dma.done [#allocation6], 256
    $region37: #{tpu_custom_call.1} parent=1 // pred_fallthru
      _
    // Predicated region
    $region38: #{tpu_custom_call.1} parent=1 // pred_check
      _
    $region39: #{tpu_custom_call.1} parent=1 // pred_check_branch
      %75 = sbr.rel (0) target = $region41
    $region40: #{tpu_custom_call.1} parent=1 // pred_region
      %76 = dma.done [#allocation6], 512
    $region41: #{tpu_custom_call.1} parent=1 // pred_fallthru
      _
    // Predicated region
    $region42: #{tpu_custom_call.1} parent=1 // pred_check
      _
    $region43: #{tpu_custom_call.1} parent=1 // pred_check_branch
      %78 = sbr.rel (0) target = $region45
    $region44: #{tpu_custom_call.1} parent=1 // pred_region
      %79 = dma.done [#allocation9], 256
    $region45: #{tpu_custom_call.1} parent=1 // pred_fallthru
      _
    %v81 = vld [vmem:[#allocation2] sm:$0x3]
    %v82 = vld [vmem:[#allocation7] sm:$0xff]
    %v83 = vld [vmem:[#allocation7 + $0x8] sm:$0xff]
    %v84 = vld [vmem:[#allocation7 + $0x10] sm:$0xff]
    %v85 = vld [vmem:[#allocation7 + $0x18] sm:$0xff]
    %v86 = vld [vmem:[%s3] sm:$0x1]
    %v88 = vlaneseq
    %v89 = vshrl.u32 %v88, 7
    %v90 = vsub.s32 0, %v89
    %v91 = vrot.slane %v86, %v90
    %vm93 = vcmask 261120
    %v95 = vsel %vm93, %v81, 0
    %v98 = vsel %vm93, %v82, 0
    %v101 = vsel %vm93, %v83, 0
    %v104 = vsel %vm93, %v84, 0
    %v107 = vsel %vm93, %v85, 0
    %109 = vmatprep.subr.mxu0 0.0
    %110 = vmatpush1.xpose.msra.mxu0 0.0
    %111 = vmatprep.subr.mxu0 0.0
    %112 = vmatpush1.xpose.msra.mxu0 0.0
    %113 = vmatprep.subr.mxu0 0.0
    %114 = vmatpush1.xpose.msra.mxu0 0.0
    %115 = vmatprep.subr.mxu0 0.0
    %116 = vmatpush1.xpose.msra.mxu0 0.0
    %117 = vmatprep.subr.mxu0 0.0
    %118 = vmatpush1.xpose.msra.mxu0 0.0
    %119 = vmatprep.subr.mxu0 0.0
    %120 = vmatpush1.xpose.msra.mxu0 0.0
    %121 = vmatprep.subr.mxu0 0.0
    %122 = vmatpush1.xpose.msra.mxu0 0.0
    %123 = vmatprep.subr.mxu0 0.0
    %124 = vmatpush1.xpose.msra.mxu0 0.0
    %125 = vmatprep.subr.mxu0 0.0
    %126 = vmatpush1.xpose.msra.mxu0 0.0
    %127 = vmatprep.subr.mxu0 0.0
    %128 = vmatpush1.xpose.msra.mxu0 0.0
    %129 = vmatprep.subr.mxu0 0.0
    %130 = vmatpush1.xpose.msra.mxu0 0.0
    %131 = vmatprep.subr.mxu0 0.0
    %132 = vmatpush1.xpose.msra.mxu0 0.0
    %133 = vmatprep.subr.mxu0 0.0
    %134 = vmatpush1.xpose.msra.mxu0 %v107
    %135 = vmatprep.subr.mxu0 0.0
    %136 = vmatpush1.xpose.msra.mxu0 %v104
    %137 = vmatprep.subr.mxu0 0.0
    %138 = vmatpush1.xpose.msra.mxu0 %v101
    %139 = vmatprep.subr.mxu0 0.0
    %140 = vmatpush1.xpose.msra.mxu0 %v98
    %141 = vmatprep.subr.mxu0 0.0
    %142 = vmatpush2.xpose.msra.mxu0 0.0
    %143 = vmatprep.subr.mxu0 0.0
    %144 = vmatpush2.xpose.msra.mxu0 0.0
    %145 = vmatprep.subr.mxu0 0.0
    %146 = vmatpush2.xpose.msra.mxu0 0.0
    %147 = vmatprep.subr.mxu0 0.0
    %148 = vmatpush2.xpose.msra.mxu0 0.0
    %149 = vmatprep.subr.mxu0 0.0
    %150 = vmatpush2.xpose.msra.mxu0 0.0
    %151 = vmatprep.subr.mxu0 0.0
    %152 = vmatpush2.xpose.msra.mxu0 0.0
    %153 = vmatprep.subr.mxu0 0.0
    %154 = vmatpush2.xpose.msra.mxu0 0.0
    %155 = vmatprep.subr.mxu0 0.0
    %156 = vmatpush2.xpose.msra.mxu0 0.0
    %157 = vmatprep.subr.mxu0 0.0
    %158 = vmatpush2.xpose.msra.mxu0 0.0
    %159 = vmatprep.subr.mxu0 0.0
    %160 = vmatpush2.xpose.msra.mxu0 0.0
    %161 = vmatprep.subr.mxu0 0.0
    %162 = vmatpush2.xpose.msra.mxu0 0.0
    %163 = vmatprep.subr.mxu0 0.0
    %164 = vmatpush2.xpose.msra.mxu0 0.0
    %165 = vmatprep.subr.mxu0 0.0
    %166 = vmatpush2.xpose.msra.mxu0 0.0
    %167 = vmatprep.subr.mxu0 0.0
    %168 = vmatpush2.xpose.msra.mxu0 0.0
    %169 = vmatprep.subr.mxu0 0.0
    %170 = vmatpush2.xpose.msra.mxu0 0.0
    %171 = vmatprep.subr.mxu0 0.0
    %172 = vmatpush2.xpose.msra.mxu0 0.0
    %173 = vmatprep.mubr.f32.mxu0 0.0
    %174 = vmatmul.mubr.f32.gmra.mxu0 %v95
    %v175 = vpop.f32.mrf.mxu0
    %v176 = vadd.f32 %v91, %v175
    %v177 = vpop.f32.mrf.mxu0
    %178 = vdwg.mxu0
    %v179 = vld [vmem:[#allocation5] sm:$0xff]
    %v180 = vld [vmem:[#allocation5 + $0x8] sm:$0xff]
    %v181 = vpack.c.bf16 %v180, %v179
    %v182 = vld [vmem:[#allocation8] sm:$0xf]
    %v183 = vld [vmem:[#allocation8 + $0x4] sm:$0xf]
    %v184 = vld [vmem:[#allocation8 + $0x8] sm:$0xf]
    %v185 = vld [vmem:[#allocation8 + $0xc] sm:$0xf]
    %v186 = vld [vmem:[%s5] sm:$0x1]
    %v188 = vlaneseq
    %v189 = vshrl.u32 %v188, 7
    %v190 = vsub.s32 0, %v189
    %v191 = vrot.slane %v186, %v190
    %v197 = vunpack.c.l.b16 %v182
    %v198 = vunpack.c.l.b16 %v183
    %v199 = vunpack.c.l.b16 %v184
    %v200 = vunpack.c.l.b16 %v185
    %v201 = vpack.c.b16 %v198, %v197
    %v202 = vpack.c.b16 %v200, %v199
    %v204 = vsel %vm93, %v181, 0
    %v207 = vsel %vm93, %v201, 0
    %v210 = vsel %vm93, %v202, 0
    %212 = vmatprep.subr.bf16.mxu0 0
    %213 = vmatpush1.bf16.xpose.msra.mxu0 0
    %214 = vmatprep.subr.bf16.mxu0 0
    %215 = vmatpush1.bf16.xpose.msra.mxu0 0
    %216 = vmatprep.subr.bf16.mxu0 0
    %217 = vmatpush1.bf16.xpose.msra.mxu0 0
    %218 = vmatprep.subr.bf16.mxu0 0
    %219 = vmatpush1.bf16.xpose.msra.mxu0 0
    %220 = vmatprep.subr.bf16.mxu0 0
    %221 = vmatpush1.bf16.xpose.msra.mxu0 0
    %222 = vmatprep.subr.bf16.mxu0 0
    %223 = vmatpush1.bf16.xpose.msra.mxu0 0
    %224 = vmatprep.subr.bf16.mxu0 0
    %225 = vmatpush1.bf16.xpose.msra.mxu0 %v210
    %226 = vmatprep.subr.bf16.mxu0 0
    %227 = vmatpush1.bf16.xpose.msra.mxu0 %v207
    %228 = vmatprep.subr.bf16.mxu0 0
    %229 = vmatpush2.bf16.xpose.msra.mxu0 0
    %230 = vmatprep.subr.bf16.mxu0 0
    %231 = vmatpush2.bf16.xpose.msra.mxu0 0
    %232 = vmatprep.subr.bf16.mxu0 0
    %233 = vmatpush2.bf16.xpose.msra.mxu0 0
    %234 = vmatprep.subr.bf16.mxu0 0
    %235 = vmatpush2.bf16.xpose.msra.mxu0 0
    %236 = vmatprep.subr.bf16.mxu0 0
    %237 = vmatpush2.bf16.xpose.msra.mxu0 0
    %238 = vmatprep.subr.bf16.mxu0 0
    %239 = vmatpush2.bf16.xpose.msra.mxu0 0
    %240 = vmatprep.subr.bf16.mxu0 0
    %241 = vmatpush2.bf16.xpose.msra.mxu0 0
    %242 = vmatprep.subr.bf16.mxu0 0
    %243 = vmatpush2.bf16.xpose.msra.mxu0 0
    %244 = vmatprep.mubr.bf16.mxu0 0
    %245 = vmatmul.mubr.bf16.gmra.mxu0 %v204
    %v246 = vpop.f32.mrf.mxu0
    %v247 = vadd.f32 %v191, %v246
    %v248 = vpop.f32.mrf.mxu0
    %v249 = vpop.f32.mrf.mxu0
    %v250 = vadd.f32 %v191, %v249
    %v251 = vpop.f32.mrf.mxu0
    %252 = vdwg.mxu0
    %v255 = vunpack.c.l.s4 1966171168
    %v256 = vunpack.c.0.s8 %v255
    %v257 = vlaneseq
    %v258 = vshrl.u32 %v257, 7
    %v259 = vsub.s32 %v256, %v258
    %v260 = vrot.slane %v176, %v259
    %v261 = vcombine.high %v260, %v260
    %v263 = vunpack.c.l.s4 1966171168
    %v264 = vunpack.c.0.s8 %v263
    %v265 = vlaneseq
    %v266 = vshrl.u32 %v265, 7
    %v267 = vsub.s32 %v264, %v266
    %v268 = vrot.slane %v260, %v267
    %v270 = vunpack.c.l.s4 1966171168
    %v271 = vunpack.c.0.s8 %v270
    %v272 = vlaneseq
    %v273 = vshrl.u32 %v272, 7
    %v274 = vsub.s32 %v271, %v273
    %v275 = vrot.slane %v261, %v274
    %v276 = vlaneseq
    %v277 = vshrl.u32 %v276, 7
    %v278 = vsub.s32 0, %v277
    %v279 = vrot.slane %v268, %v278
    %v280 = vlaneseq
    %v281 = vshrl.u32 %v280, 7
    %v282 = vsub.s32 0, %v281
    %v283 = vrot.slane %v275, %v282
    %v286 = vadd.f32 %v247, %v279
    %v287 = vadd.f32 %v250, %v283
    %v288 = vtanh.pop %v286
    %v289 = vtanh.pop %v287
    %v290 = vld [vmem:[%s6] sm:$0x1]
    %v292 = vlaneseq
    %v293 = vshrl.u32 %v292, 7
    %v294 = vsub.s32 0, %v293
    %v295 = vrot.slane %v290, %v294
    %v297 = vmul.f32 %v288, %v295
    %v298 = vmul.f32 %v289, %v295
    %v299 = vsel %vm93, %v297, 0.0
    %300 = vadd.xlane.f32.xlu0 %v299
    %v301 = vpop.xlane.xlu0 %300
    %v302 = vsel %vm93, %v298, 0.0
    %303 = vadd.xlane.f32.xlu0 %v302
    %v304 = vpop.xlane.xlu0 %303
    %v307 = vlaneseq
    %v308 = vand.u32 %v307, 127
    %v309 = vlaneseq
    %v310 = vshrl.u32 %v309, 7
    %v311 = vsub.s32 %v308, %v310
    %v312 = vrot.slane %v301, %v311
    %v313 = vlaneseq
    %v314 = vshrl.u32 %v313, 7
    %v315 = vsub.s32 %v308, %v314
    %v316 = vrot.slane %v304, %v315
    %vm317 = vcmask 1041409
    %v318 = vsel %vm317, %v316, %v312
    %vm320 = vcmask 58368
    %v321 = vsel %vm320, %v318, -inf
    %322 = vmax.xlane.f32.xlu0 %v321
    %v323 = vpop.xlane.xlu0 %322
    %v325 = vlaneseq
    %v326 = vshrl.u32 %v325, 7
    %v327 = vsub.s32 0, %v326
    %v328 = vrot.slane %v323, %v327
    %v329 = vlaneseq
    %v330 = vshrl.u32 %v329, 7
    %v331 = vsub.s32 1, %v330
    %v332 = vrot.slane %v323, %v331
    %v335 = vsub.f32 %v301, %v328
    %v336 = vsub.f32 %v304, %v332
    %v337 = vmul.f32 %v335, 1.442695
    %v338 = vpow.pop %v337
    %v339 = vmul.f32 %v336, 1.442695
    %v340 = vpow.pop %v339
    %343 = vset.pattern.permute.xlu0 0
    %344 = vperm.xlu0 %343, %v338
    %v345 = vpop.permute.xlu0 %344
    %346 = vset.pattern.permute.xlu0 0
    %347 = vperm.xlu0 %346, %v340
    %v348 = vpop.permute.xlu0 %347
    %v349 = vlaneseq
    %v350 = vshrl.u32 %v349, 7
    %v351 = vsub.s32 %v308, %v350
    %v352 = vrot.slane %v345, %v351
    %v353 = vlaneseq
    %v354 = vshrl.u32 %v353, 7
    %v355 = vsub.s32 %v308, %v354
    %v356 = vrot.slane %v348, %v355
    %v357 = vsel %vm317, %v356, %v352
    %v359 = vsel %vm320, %v357, 0.0
    %360 = vadd.xlane.f32.xlu0 %v359
    %v361 = vpop.xlane.xlu0 %360
    %v362 = vrcp.pop %v361
    %v364 = vlaneseq
    %v365 = vshrl.u32 %v364, 7
    %v366 = vsub.s32 0, %v365
    %v367 = vrot.slane %v362, %v366
    %v368 = vlaneseq
    %v369 = vshrl.u32 %v368, 7
    %v370 = vsub.s32 1, %v369
    %v371 = vrot.slane %v362, %v370
    %v374 = vmul.f32 %v338, %v367
    %v375 = vmul.f32 %v340, %v371
    %378 = vset.pattern.permute.xlu0 0
    %379 = vperm.xlu0 %378, %v374
    %v380 = vpop.permute.xlu0 %379
    %381 = vset.pattern.permute.xlu0 0
    %382 = vperm.xlu0 %381, %v375
    %v383 = vpop.permute.xlu0 %382
    %v384 = vlaneseq
    %v385 = vshrl.u32 %v384, 7
    %v386 = vsub.s32 %v308, %v385
    %v387 = vrot.slane %v380, %v386
    %v388 = vlaneseq
    %v389 = vshrl.u32 %v388, 7
    %v390 = vsub.s32 %v308, %v389
    %v391 = vrot.slane %v383, %v390
    %v392 = vsel %vm317, %v391, %v387
    %394 = vst.msk [vmem:[#allocation10] sm:$0x3] %vm320, %v392
    // Predicated region
    $region46: #{tpu_custom_call.1} parent=1 // pred_check
      _
    $region47: #{tpu_custom_call.1} parent=1 // pred_check_branch
      %396 = sbr.rel (0) target = $region49
    $region48: #{tpu_custom_call.1} parent=1 // pred_region
      %s398 = ssub.s32 32, 32
      %399 = vsyncadd [#allocation4], %s398
      %s401 = sshll.u32 [#allocation10], 4
      %s402 = int_to_ptr.vmem [resolvable:$true] %s401
      %404 = dma.vmem_to_hbm [thread:$0]  %s402, 32, %s7, [#allocation4]
    $region49: #{tpu_custom_call.1} parent=1 // pred_fallthru
      _
    // Predicated region
    $region50: #{tpu_custom_call.1} parent=1 // pred_check
      _
    $region51: #{tpu_custom_call.1} parent=1 // pred_check_branch
      %406 = sbr.rel (0) target = $region53
    $region52: #{tpu_custom_call.1} parent=1 // pred_region
      %407 = dma.done [#allocation4], 32
    $region53: #{tpu_custom_call.1} parent=1 // pred_fallthru
      _
    %408 = vsyncpa [#allocation3], 1
    %409 = vsyncpa [#allocation6], 1
    %410 = vsyncpa [#allocation9], 1
    %411 = vsyncpa [#allocation4], 1

</llo_original>
